<compile_context>
chip_gen: v7x
topology: tpu7x:2x2x1
jax: 0.10.0
libtpu: 0.0.40
codegen_flags: <defaults>
</compile_context>

<pallas_src>
import math

import jax
import jax.numpy as jnp
from jax.experimental import pallas as pl
from jax.experimental.pallas import tpu as pltpu


# ----------------------------------------------------------------------------
# Pallas kernel: one-hot MXU gather from folded table -> Linear -> SiLU
# ----------------------------------------------------------------------------
def _silu_f32(x):
    # silu(x) = x * sigmoid(x); exp rides the EUP slot.  approx=False: exact
    # reciprocal, negligible cost at (tb, 128), avoids approx-at-inf concerns.
    return x * pl.reciprocal(1.0 + jnp.exp(-x), approx=False)


def _diffusion_embedding_kernel(steps_ref,   # VMEM (tb, 1) int32
                                htab_ref,    # VMEM (S, D)  bf16  = silu(table @ w1.T + b1)
                                w2_ref,      # VMEM (D, P)  bf16
                                b2_ref,      # VMEM (1, P)  f32
                                o_ref):      # VMEM (tb, P) f32
    tb = o_ref.shape[0]
    S = htab_ref.shape[0]

    # ---- one-hot MXU gather of the (already projected+SiLU'd) table rows ----
    steps = steps_ref[...]                                            # (tb, 1) int32
    iota = jax.lax.broadcasted_iota(jnp.int32, (tb, S), 1)            # (tb, S)
    onehot = (iota == steps).astype(jnp.bfloat16)                     # (tb, S) 0/1
    h = jnp.dot(onehot, htab_ref[...],
                preferred_element_type=jnp.float32)                   # (tb, D) exact rows
    h = h.astype(jnp.bfloat16)

    # ---- projection2 + SiLU (bf16 MXU, f32 accumulate / activation) ----
    y = jnp.dot(h, w2_ref[...],
                preferred_element_type=jnp.float32) + b2_ref[...]     # (tb, P) f32
    o_ref[...] = _silu_f32(y).astype(o_ref.dtype)


def diffusion_embedding_forward(diffusion_step, params, *, block_b=None):
    """diffusion_step: (B,) int32 indices into the embedding table.
       params: dict from prepare_params().
       returns (B, P) float32."""
    htab = params["h_table"]            # (S, D) bf16
    w2, b2 = params["w2"], params["b2"]  # (D, P) bf16, (1, P) f32

    B = diffusion_step.shape[0]
    S, D = htab.shape
    P = w2.shape[1]

    if block_b is None:
        # <=256: one tile (splitting a small batch only adds ~0.35us/step
        # overhead).  >256: 256-row tiles fill the v6e/v7x MXU and give the
        # grid >=2 steps so "parallel" can shard across v7x TensorCores.
        block_b = B if B <= 256 else 256
    assert B % block_b == 0, "batch must be divisible by the batch tile"
    grid = (B // block_b,)

    steps_2d = diffusion_step.astype(jnp.int32).reshape(B, 1)

    return pl.pallas_call(
        _diffusion_embedding_kernel,
        out_shape=jax.ShapeDtypeStruct((B, P), jnp.float32),
        grid=grid,
        in_specs=[
            pl.BlockSpec((block_b, 1), lambda i: (i, 0)),   # steps (per batch tile)
            pl.BlockSpec((S, D), lambda i: (0, 0)),         # folded table (VMEM-resident)
            pl.BlockSpec((D, P), lambda i: (0, 0)),         # w2 (VMEM-resident)
            pl.BlockSpec((1, P), lambda i: (0, 0)),         # b2
        ],
        out_specs=pl.BlockSpec((block_b, P), lambda i: (i, 0)),
        compiler_params=pltpu.CompilerParams(
            dimension_semantics=("parallel",)),             # batch tiles shard across TCs
    )(steps_2d, htab, w2, b2)


# ----------------------------------------------------------------------------
# Module construction (deterministic, in-script) + one-time param prep
# ----------------------------------------------------------------------------
def build_embedding_table(num_steps, dim):
    # Matches torch _build_embedding exactly.
    steps = jnp.arange(num_steps, dtype=jnp.float32)[:, None]            # (S, 1)
    frequencies = 10.0 ** (jnp.arange(dim, dtype=jnp.float32)
                           / (dim - 1) * 4.0)[None, :]                   # (1, D)
    return jnp.sin(steps * frequencies)                                  # (S, D)


def init_linear(key, in_features, out_features):
    # Deterministic torch-style init; weight is (out, in) like nn.Linear.
    kw, kb = jax.random.split(key)
    bound = 1.0 / math.sqrt(in_features)
    w = jax.random.uniform(kw, (out_features, in_features), jnp.float32,
                           minval=-bound, maxval=bound)
    b = jax.random.uniform(kb, (out_features,), jnp.float32,
                           minval=-bound, maxval=bound)
    return w, b


def prepare_params(table, w1, b1, w2, b2):
    # One-time layout/precision/algebra prep, OFF the per-call path:
    #   * projection1 + SiLU folded into the table (exact f32 math), stored
    #     bf16 and kept 2-D (S, D) so it is lane/sublane-dense and feeds the
    #     one-hot MXU gather directly,
    #   * w2 -> (in, out) bf16 (no per-call transpose, half the DMA),
    #   * b2 stays f32, shaped (1, out) for broadcasting.
    # TODO(synk): if a fractional-step (lerp) path is ever needed, the layer-1
    # fold must be undone and the table indexed with interpolation weights.
    h = table @ w1.T + b1[None, :]
    h = h * jax.nn.sigmoid(h)                       # exact f32 SiLU
    return dict(
        h_table=h.astype(jnp.bfloat16),             # (S, D)
        w2=w2.T.astype(jnp.bfloat16),               # (D, P)
        b2=b2[None, :].astype(jnp.float32),         # (1, P)
    )


def reference_forward(diffusion_step, table, w1, b1, w2, b2):
    # Pure-JAX f32 reference mirroring the PyTorch forward.
    x = table[diffusion_step]
    x = x @ w1.T + b1
    x = x * jax.nn.sigmoid(x)
    x = x @ w2.T + b2
    x = x * jax.nn.sigmoid(x)
    return x


if __name__ == "__main__":
    num_steps = 50
    embedding_dim = 128
    projection_dim = 128
    batch = 8

    key = jax.random.PRNGKey(0)
    k1, k2, k3 = jax.random.split(key, 3)

    table = build_embedding_table(num_steps, embedding_dim)
    w1, b1 = init_linear(k1, embedding_dim, embedding_dim)
    w2, b2 = init_linear(k2, embedding_dim, projection_dim)
    params = prepare_params(table, w1, b1, w2, b2)

    diffusion_step = jax.random.randint(k3, (batch,), 0, num_steps, dtype=jnp.int32)

    out = diffusion_embedding_forward(diffusion_step, params)
    out = jax.block_until_ready(out)

    ref = reference_forward(diffusion_step, table, w1, b1, w2, b2)
    assert out.shape == (batch, projection_dim)
    # bf16 storage of the folded table / w2 => compare at ~1e-2 level.
    max_err = float(jnp.max(jnp.abs(out - ref)))
    assert jnp.allclose(out, ref, atol=2e-2, rtol=2e-2), (
        f"mismatch vs reference: max abs err {max_err}")

    print("KERNEL_OK")
</pallas_src>

<mosaic_0001>
module attributes {stable_mosaic.version = 11 : i64} {
  func.func @_diffusion_embedding_kernel(%arg0: i32, %arg1: memref<8x1xi32, #tpu.memory_space<vmem>>, %arg2: memref<50x128xbf16, #tpu.memory_space<vmem>>, %arg3: memref<128x128xbf16, #tpu.memory_space<vmem>>, %arg4: memref<1x128xf32, #tpu.memory_space<vmem>>, %arg5: memref<8x128xf32, #tpu.memory_space<vmem>>) attributes {dimension_semantics = [#tpu.dimension_semantics<parallel>], iteration_bounds = array<i64: 1>, scalar_prefetch = 0 : i64, scratch_operands = 0 : i64, tpu.core_type = #tpu.core_type<tc>, window_params = [{transform_indices = @transform_0, window_bounds = array<i64: 8, 1>}, {pipeline_mode = #tpu.pipeline_mode<synchronous>, transform_indices = @transform_1, window_bounds = array<i64: 50, 128>}, {pipeline_mode = #tpu.pipeline_mode<synchronous>, transform_indices = @transform_2, window_bounds = array<i64: 128, 128>}, {pipeline_mode = #tpu.pipeline_mode<synchronous>, transform_indices = @transform_3, window_bounds = array<i64: 1, 128>}, {transform_indices = @transform_4, window_bounds = array<i64: 8, 128>}]} {
    %c0 = arith.constant 0 : index
    %c0_0 = arith.constant 0 : index
    %0 = vector.load %arg1[%c0, %c0_0] : memref<8x1xi32, #tpu.memory_space<vmem>>, vector<8x1xi32>
    %1 = tpu.iota {dimensions = array<i32: 1>} : vector<8x50xi32>
    %2 = vector.broadcast %0 : vector<8x1xi32> to vector<8x50xi32>
    %3 = arith.cmpi eq, %1, %2 : vector<8x50xi32>
    %4 = arith.extui %3 : vector<8x50xi1> to vector<8x50xi32>
    %5 = arith.sitofp %4 : vector<8x50xi32> to vector<8x50xf32>
    %6 = arith.truncf %5 : vector<8x50xf32> to vector<8x50xbf16>
    %c0_1 = arith.constant 0 : index
    %c0_2 = arith.constant 0 : index
    %7 = vector.load %arg2[%c0_1, %c0_2] : memref<50x128xbf16, #tpu.memory_space<vmem>>, vector<50x128xbf16>
    %cst = arith.constant dense<0.000000e+00> : vector<8x128xf32>
    %8 = tpu.matmul %6, %7, %cst {dimension_numbers = #tpu.dot_dimension_numbers<[1], [0], [0], [1], [0, 0, 1, 1], [], []>} : vector<8x50xbf16>, vector<50x128xbf16>, vector<8x128xf32> -> vector<8x128xf32>
    %9 = arith.truncf %8 : vector<8x128xf32> to vector<8x128xbf16>
    %c0_3 = arith.constant 0 : index
    %c0_4 = arith.constant 0 : index
    %10 = vector.load %arg3[%c0_3, %c0_4] : memref<128x128xbf16, #tpu.memory_space<vmem>>, vector<128x128xbf16>
    %cst_5 = arith.constant dense<0.000000e+00> : vector<8x128xf32>
    %11 = tpu.matmul %9, %10, %cst_5 {dimension_numbers = #tpu.dot_dimension_numbers<[1], [0], [0], [1], [0, 0, 1, 1], [], []>} : vector<8x128xbf16>, vector<128x128xbf16>, vector<8x128xf32> -> vector<8x128xf32>
    %c0_6 = arith.constant 0 : index
    %c0_7 = arith.constant 0 : index
    %12 = vector.load %arg4[%c0_6, %c0_7] : memref<1x128xf32, #tpu.memory_space<vmem>>, vector<1x128xf32>
    %13 = vector.broadcast %12 : vector<1x128xf32> to vector<8x128xf32>
    %14 = arith.addf %11, %13 : vector<8x128xf32>
    %cst_8 = arith.constant 0.000000e+00 : f32
    %15 = vector.broadcast %cst_8 : f32 to vector<8x128xf32>
    %16 = arith.subf %15, %14 : vector<8x128xf32>
    %17 = math.exp %16 : vector<8x128xf32>
    %cst_9 = arith.constant 1.000000e+00 : f32
    %18 = vector.broadcast %cst_9 : f32 to vector<8x128xf32>
    %19 = arith.addf %18, %17 : vector<8x128xf32>
    %20 = tpu.reciprocal %19 : vector<8x128xf32> -> vector<8x128xf32>
    %21 = arith.mulf %14, %20 : vector<8x128xf32>
    %c0_10 = arith.constant 0 : index
    %c0_11 = arith.constant 0 : index
    %22 = vector.load %arg5[%c0_10, %c0_11] : memref<8x128xf32, #tpu.memory_space<vmem>>, vector<8x128xf32>
    tpu.vector_store %arg5[%c0_10, %c0_11], %21 {strides = array<i32>} : memref<8x128xf32, #tpu.memory_space<vmem>>, vector<8x128xf32>,
    return
  }
  func.func @transform_0(%arg0: i32) -> (i32, i32) {
    %c0_i32 = arith.constant 0 : i32
    %c0_i32_0 = arith.constant 0 : i32
    return %arg0, %c0_i32 : i32, i32
  }
  func.func @transform_1(%arg0: i32) -> (i32, i32) {
    %c0_i32 = arith.constant 0 : i32
    %c0_i32_0 = arith.constant 0 : i32
    %c0_i32_1 = arith.constant 0 : i32
    return %c0_i32, %c0_i32_0 : i32, i32
  }
  func.func @transform_2(%arg0: i32) -> (i32, i32) {
    %c0_i32 = arith.constant 0 : i32
    %c0_i32_0 = arith.constant 0 : i32
    %c0_i32_1 = arith.constant 0 : i32
    return %c0_i32, %c0_i32_0 : i32, i32
  }
  func.func @transform_3(%arg0: i32) -> (i32, i32) {
    %c0_i32 = arith.constant 0 : i32
    %c0_i32_0 = arith.constant 0 : i32
    %c0_i32_1 = arith.constant 0 : i32
    return %c0_i32, %c0_i32_0 : i32, i32
  }
  func.func @transform_4(%arg0: i32) -> (i32, i32) {
    %c0_i32 = arith.constant 0 : i32
    %c0_i32_0 = arith.constant 0 : i32
    return %arg0, %c0_i32 : i32, i32
  }
}

</mosaic_0001>

<llo_original>
// kernel: tpu_custom_call.1
$region0: #{tpu_custom_call.1}
  #allocation0 [shape = 'u32[]', space=smem, size = 0x4, offset = 0x4, fixed_abs, tag = 'smem constant byte address 0x4 - core index']
  #allocation1 [shape = 'u32[144,128]{1,0:T(1,128)}', space=vmem, size = 0x12000, scoped, tag = 'internal scratch']
  %s0 = inlined_call_operand.vmem [shape: s32[8,1], index: 0, kind: input, shape index: {}]
  %s1 = inlined_call_operand.hbm [shape: bf16[50,128], index: 1, kind: input, shape index: {}]
  %s2 = inlined_call_operand.hbm [shape: bf16[128,128], index: 2, kind: input, shape index: {}]
  %s3 = inlined_call_operand.vmem [shape: f32[1,128], index: 3, kind: input, shape index: {}]
  %s4 = inlined_call_operand.hbm [shape: f32[8,128], index: 4, kind: output, shape index: {}]
  %s5 = sld [smem:[#allocation0]]
  $region34: #{tpu_custom_call.1} parent=0
    _
  %s7 = ssub.s32 1, %s5
  %s8 = scalar_select 0, %s7, %s5
  $region1: #{tpu_custom_call.1} parent=0
    #allocation2 [shape = 'u8[14336]{0}', space=vmem, size = 0x3800, scoped, tag = 'input window, operand 1, single buffered']
    #allocation3 [shape = 's32[1]{0}', space=sflag, size = 0x4, scoped, tag = 'scoped memory for tpu_custom_call.1']
    #allocation4 [shape = 's32[1]{0}', space=sflag, size = 0x4, scoped, tag = 'scoped memory for tpu_custom_call.1']
    #allocation5 [shape = 'u8[32768]{0}', space=vmem, size = 0x8000, scoped, tag = 'input window, operand 2, single buffered']
    #allocation6 [shape = 's32[1]{0}', space=sflag, size = 0x4, scoped, tag = 'scoped memory for tpu_custom_call.1']
    #allocation7 [shape = 'u8[4096]{0}', space=vmem, size = 0x1000, scoped, tag = 'output window, operand 0, single buffered']
    %9 = vsyncpa [#allocation3], 0
    %10 = vsyncpa [#allocation6], 0
    %11 = vsyncpa [#allocation4], 0
    // Predicated region
    $region2: #{tpu_custom_call.1} parent=1 // pred_check
      _
    $region3: #{tpu_custom_call.1} parent=1 // pred_check_branch
      %13 = sbr.rel (0) target = $region5
    $region4: #{tpu_custom_call.1} parent=1 // pred_region
      _
    $region5: #{tpu_custom_call.1} parent=1 // pred_fallthru
      _
    // Predicated region
    $region6: #{tpu_custom_call.1} parent=1 // pred_check
      _
    $region7: #{tpu_custom_call.1} parent=1 // pred_check_branch
      %15 = sbr.rel (0) target = $region9
    $region8: #{tpu_custom_call.1} parent=1 // pred_region
      %s17 = ssub.s32 448, 448
      %18 = vsyncadd [#allocation3], %s17
      %s19 = sshll.u32 [#allocation2], 4
      %s20 = int_to_ptr.vmem [resolvable:$true] %s19
      %25 = dma.hbm_to_vmem [thread:$0]  %s1, 448, %s20, [#allocation3], 64, 64, 4
    $region9: #{tpu_custom_call.1} parent=1 // pred_fallthru
      _
    // Predicated region
    $region10: #{tpu_custom_call.1} parent=1 // pred_check
      _
    $region11: #{tpu_custom_call.1} parent=1 // pred_check_branch
      %27 = sbr.rel (0) target = $region13
    $region12: #{tpu_custom_call.1} parent=1 // pred_region
      %s29 = ssub.s32 1024, 1024
      %30 = vsyncadd [#allocation6], %s29
      %s31 = sshll.u32 [#allocation5], 4
      %s32 = int_to_ptr.vmem [resolvable:$true] %s31
      %37 = dma.hbm_to_vmem [thread:$0]  %s2, 1024, %s32, [#allocation6], 64, 64, 4
    $region13: #{tpu_custom_call.1} parent=1 // pred_fallthru
      _
    // Predicated region
    $region14: #{tpu_custom_call.1} parent=1 // pred_check
      _
    $region15: #{tpu_custom_call.1} parent=1 // pred_check_branch
      %39 = sbr.rel (0) target = $region17
    $region16: #{tpu_custom_call.1} parent=1 // pred_region
      _
    $region17: #{tpu_custom_call.1} parent=1 // pred_fallthru
      _
    // Predicated region
    $region18: #{tpu_custom_call.1} parent=1 // pred_check
      _
    $region19: #{tpu_custom_call.1} parent=1 // pred_check_branch
      %41 = sbr.rel (0) target = $region21
    $region20: #{tpu_custom_call.1} parent=1 // pred_region
      %42 = dma.done [#allocation3], 448
    $region21: #{tpu_custom_call.1} parent=1 // pred_fallthru
      _
    // Predicated region
    $region22: #{tpu_custom_call.1} parent=1 // pred_check
      _
    $region23: #{tpu_custom_call.1} parent=1 // pred_check_branch
      %44 = sbr.rel (0) target = $region25
    $region24: #{tpu_custom_call.1} parent=1 // pred_region
      %45 = dma.done [#allocation6], 1024
    $region25: #{tpu_custom_call.1} parent=1 // pred_fallthru
      _
    %v47 = vld [vmem:[%s0] sm:$0xff]
    %v48 = vlaneseq
    %v49 = vand.u32 %v48, 127
    %50 = vset.pattern.permute.xlu0 0
    %51 = vperm.xlu0 %50, %v47
    %v52 = vpop.permute.xlu0 %51
    %vm53 = vcmp.eq.s32.totalorder %v49, %v52
    %v54 = vsel %vm53, 1, 0
    %v55 = vcvt.s32.f32 %v54
    %v56 = vpack.c.bf16 %v55, %v55
    %v57 = vld [vmem:[#allocation2] sm:$0xf]
    %v58 = vld [vmem:[#allocation2 + $0x4] sm:$0xf]
    %v59 = vld [vmem:[#allocation2 + $0x8] sm:$0xf]
    %v60 = vld [vmem:[#allocation2 + $0xc] sm:$0xf]
    %v61 = vld [vmem:[#allocation2 + $0x10] sm:$0xf]
    %v62 = vld [vmem:[#allocation2 + $0x14] sm:$0xf]
    %v63 = vld [vmem:[#allocation2 + $0x18] sm:$0x1]
    %v71 = vunpack.c.l.b16 %v57
    %v72 = vunpack.c.l.b16 %v58
    %v73 = vunpack.c.l.b16 %v59
    %v74 = vunpack.c.l.b16 %v60
    %v75 = vunpack.c.l.b16 %v61
    %v76 = vunpack.c.l.b16 %v62
    %v77 = vunpack.c.l.b16 %v63
    %v78 = vpack.c.b16 %v72, %v71
    %v79 = vpack.c.b16 %v74, %v73
    %v80 = vpack.c.b16 %v76, %v75
    %v81 = vpack.c.b16 %v77, %v77
    %vm85 = vcmask 408576
    %v87 = vsel %vm85, %v56, 0
    %vm89 = vcmask 1040384
    %v91 = vsel %vm89, %v81, 0
    %93 = vmatprep.subr.bf16.mxu0 0
    %94 = vmatpush1.bf16.msra.mxu0 %v78
    %95 = vmatprep.subr.bf16.mxu0 0
    %96 = vmatpush1.bf16.msra.mxu0 %v79
    %97 = vmatprep.subr.bf16.mxu0 0
    %98 = vmatpush1.bf16.msra.mxu0 %v80
    %99 = vmatprep.subr.bf16.mxu0 0
    %100 = vmatpush1.bf16.msra.mxu0 %v91
    %101 = vmatprep.subr.bf16.mxu0 0
    %102 = vmatpush1.bf16.msra.mxu0 0
    %103 = vmatprep.subr.bf16.mxu0 0
    %104 = vmatpush1.bf16.msra.mxu0 0
    %105 = vmatprep.subr.bf16.mxu0 0
    %106 = vmatpush1.bf16.msra.mxu0 0
    %107 = vmatprep.subr.bf16.mxu0 0
    %108 = vmatpush1.bf16.msra.mxu0 0
    %109 = vmatprep.subr.bf16.mxu0 0
    %110 = vmatpush1.bf16.msra.mxu0 0
    %111 = vmatprep.subr.bf16.mxu0 0
    %112 = vmatpush1.bf16.msra.mxu0 0
    %113 = vmatprep.subr.bf16.mxu0 0
    %114 = vmatpush1.bf16.msra.mxu0 0
    %115 = vmatprep.subr.bf16.mxu0 0
    %116 = vmatpush1.bf16.msra.mxu0 0
    %117 = vmatprep.subr.bf16.mxu0 0
    %118 = vmatpush1.bf16.msra.mxu0 0
    %119 = vmatprep.subr.bf16.mxu0 0
    %120 = vmatpush1.bf16.msra.mxu0 0
    %121 = vmatprep.subr.bf16.mxu0 0
    %122 = vmatpush1.bf16.msra.mxu0 0
    %123 = vmatprep.subr.bf16.mxu0 0
    %124 = vmatpush1.bf16.msra.mxu0 0
    %125 = vmatprep.mubr.bf16.mxu0 0
    %126 = vmatmul.mubr.bf16.gmra.mrb[0].mxu0 %v87
    %v127 = vpop.f32.mrb[0].mxu0
    %v128 = vadd.f32 0.0, %v127
    %v129 = vpop.f32.mrb[0].mxu0
    %v130 = vpop.f32.mrb[0].mxu0
    %v131 = vpop.f32.mrb[0].mxu0
    %132 = vdwg.mxu0
    %v133 = vpack.c.bf16 %v128, %v128
    %v134 = vld [vmem:[#allocation5] sm:$0xf]
    %v135 = vld [vmem:[#allocation5 + $0x4] sm:$0xf]
    %v136 = vld [vmem:[#allocation5 + $0x8] sm:$0xf]
    %v137 = vld [vmem:[#allocation5 + $0xc] sm:$0xf]
    %v138 = vld [vmem:[#allocation5 + $0x10] sm:$0xf]
    %v139 = vld [vmem:[#allocation5 + $0x14] sm:$0xf]
    %v140 = vld [vmem:[#allocation5 + $0x18] sm:$0xf]
    %v141 = vld [vmem:[#allocation5 + $0x1c] sm:$0xf]
    %v142 = vld [vmem:[#allocation5 + $0x20] sm:$0xf]
    %v143 = vld [vmem:[#allocation5 + $0x24] sm:$0xf]
    %v144 = vld [vmem:[#allocation5 + $0x28] sm:$0xf]
    %v145 = vld [vmem:[#allocation5 + $0x2c] sm:$0xf]
    %v146 = vld [vmem:[#allocation5 + $0x30] sm:$0xf]
    %v147 = vld [vmem:[#allocation5 + $0x34] sm:$0xf]
    %v148 = vld [vmem:[#allocation5 + $0x38] sm:$0xf]
    %v149 = vld [vmem:[#allocation5 + $0x3c] sm:$0xf]
    %v150 = vld [vmem:[%s3] sm:$0x1]
    %v152 = vlaneseq
    %v153 = vshrl.u32 %v152, 7
    %v154 = vsub.s32 0, %v153
    %v155 = vrot.slane %v150, %v154
    %v173 = vunpack.c.l.b16 %v134
    %v174 = vunpack.c.l.b16 %v135
    %v175 = vunpack.c.l.b16 %v136
    %v176 = vunpack.c.l.b16 %v137
    %v177 = vunpack.c.l.b16 %v138
    %v178 = vunpack.c.l.b16 %v139
    %v179 = vunpack.c.l.b16 %v140
    %v180 = vunpack.c.l.b16 %v141
    %v181 = vunpack.c.l.b16 %v142
    %v182 = vunpack.c.l.b16 %v143
    %v183 = vunpack.c.l.b16 %v144
    %v184 = vunpack.c.l.b16 %v145
    %v185 = vunpack.c.l.b16 %v146
    %v186 = vunpack.c.l.b16 %v147
    %v187 = vunpack.c.l.b16 %v148
    %v188 = vunpack.c.l.b16 %v149
    %v189 = vpack.c.b16 %v174, %v173
    %v190 = vpack.c.b16 %v176, %v175
    %v191 = vpack.c.b16 %v178, %v177
    %v192 = vpack.c.b16 %v180, %v179
    %v193 = vpack.c.b16 %v182, %v181
    %v194 = vpack.c.b16 %v184, %v183
    %v195 = vpack.c.b16 %v186, %v185
    %v196 = vpack.c.b16 %v188, %v187
    %205 = vmatprep.subr.bf16.mxu0 0
    %206 = vmatpush1.bf16.msra.mxu0 %v189
    %207 = vmatprep.subr.bf16.mxu0 0
    %208 = vmatpush1.bf16.msra.mxu0 %v190
    %209 = vmatprep.subr.bf16.mxu0 0
    %210 = vmatpush1.bf16.msra.mxu0 %v191
    %211 = vmatprep.subr.bf16.mxu0 0
    %212 = vmatpush1.bf16.msra.mxu0 %v192
    %213 = vmatprep.subr.bf16.mxu0 0
    %214 = vmatpush1.bf16.msra.mxu0 %v193
    %215 = vmatprep.subr.bf16.mxu0 0
    %216 = vmatpush1.bf16.msra.mxu0 %v194
    %217 = vmatprep.subr.bf16.mxu0 0
    %218 = vmatpush1.bf16.msra.mxu0 %v195
    %219 = vmatprep.subr.bf16.mxu0 0
    %220 = vmatpush1.bf16.msra.mxu0 %v196
    %221 = vmatprep.subr.bf16.mxu0 0
    %222 = vmatpush1.bf16.msra.mxu0 0
    %223 = vmatprep.subr.bf16.mxu0 0
    %224 = vmatpush1.bf16.msra.mxu0 0
    %225 = vmatprep.subr.bf16.mxu0 0
    %226 = vmatpush1.bf16.msra.mxu0 0
    %227 = vmatprep.subr.bf16.mxu0 0
    %228 = vmatpush1.bf16.msra.mxu0 0
    %229 = vmatprep.subr.bf16.mxu0 0
    %230 = vmatpush1.bf16.msra.mxu0 0
    %231 = vmatprep.subr.bf16.mxu0 0
    %232 = vmatpush1.bf16.msra.mxu0 0
    %233 = vmatprep.subr.bf16.mxu0 0
    %234 = vmatpush1.bf16.msra.mxu0 0
    %235 = vmatprep.subr.bf16.mxu0 0
    %236 = vmatpush1.bf16.msra.mxu0 0
    %237 = vmatprep.mubr.bf16.mxu0 0
    %238 = vmatmul.mubr.bf16.gmra.mrb[0].mxu0 %v133
    %v239 = vpop.f32.mrb[0].mxu0
    %v240 = vadd.f32 %v155, %v239
    %v241 = vpop.f32.mrb[0].mxu0
    %v242 = vpop.f32.mrb[0].mxu0
    %v243 = vpop.f32.mrb[0].mxu0
    %244 = vdwg.mxu0
    %v245 = vsub.f32 0.0, %v240
    %v246 = vmul.f32 %v245, 1.442695
    %v247 = vpow.pop %v246
    %v248 = vadd.f32 %v247, 1.0
    %v249 = vrcp.pop %v248
    %v250 = vmul.f32 %v240, %v249
    %251 = vst [vmem:[#allocation7] sm:$0xff] %v250
    // Predicated region
    $region26: #{tpu_custom_call.1} parent=1 // pred_check
      _
    $region27: #{tpu_custom_call.1} parent=1 // pred_check_branch
      %253 = sbr.rel (0) target = $region29
    $region28: #{tpu_custom_call.1} parent=1 // pred_region
      %s255 = ssub.s32 128, 128
      %256 = vsyncadd [#allocation4], %s255
      %s258 = sshll.u32 [#allocation7], 4
      %s259 = int_to_ptr.vmem [resolvable:$true] %s258
      %261 = dma.vmem_to_hbm [thread:$0]  %s259, 128, %s4, [#allocation4]
    $region29: #{tpu_custom_call.1} parent=1 // pred_fallthru
      _
    // Predicated region
    $region30: #{tpu_custom_call.1} parent=1 // pred_check
      _
    $region31: #{tpu_custom_call.1} parent=1 // pred_check_branch
      %263 = sbr.rel (0) target = $region33
    $region32: #{tpu_custom_call.1} parent=1 // pred_region
      %264 = dma.done [#allocation4], 128
    $region33: #{tpu_custom_call.1} parent=1 // pred_fallthru
      _
    %265 = vsyncpa [#allocation3], 1
    %266 = vsyncpa [#allocation6], 1
    %267 = vsyncpa [#allocation4], 1

</llo_original>
